<compile_context>
chip_gen: v7x
topology: tpu7x:2x2x1
jax: 0.10.0
libtpu: 0.0.40
codegen_flags: <defaults>
</compile_context>

<pallas_src>
import jax
import jax.numpy as jnp
from jax import lax
from jax.experimental import pallas as pl
from jax.experimental.pallas import tpu as pltpu


def _mlp_kernel(x_ref, w1t_ref, w2t_ref, w3t_ref, w4t_ref,
                b1_ref, b2_ref, b3_ref, b4_ref, o_ref):
    """Whole (BN-folded) forward pass for one batch tile, feature-major in VMEM."""
    x = x_ref[...].astype(jnp.bfloat16)                       # (tile_b, F)

    # Layer 1: (48, F) . (tile_b, F) contracted over F -> (48, tile_b)
    h = lax.dot_general(
        w1t_ref[...], x,
        dimension_numbers=(((1,), (1,)), ((), ())),
        preferred_element_type=jnp.float32)
    h = jnp.maximum(h + b1_ref[...], 0.0)

    # Layer 2: (24, 48) @ (48, tile_b) -> (24, tile_b)
    h = jnp.dot(w2t_ref[...], h.astype(jnp.bfloat16),
                preferred_element_type=jnp.float32)
    h = jnp.maximum(h + b2_ref[...], 0.0)

    # Layer 3: (12, 24) @ (24, tile_b) -> (12, tile_b)
    h = jnp.dot(w3t_ref[...], h.astype(jnp.bfloat16),
                preferred_element_type=jnp.float32)
    h = jnp.maximum(h + b3_ref[...], 0.0)

    # Layer 4: (1, 12) @ (12, tile_b) -> (1, tile_b), lane-dense store
    out = jnp.dot(w4t_ref[...], h.astype(jnp.bfloat16),
                  preferred_element_type=jnp.float32)
    o_ref[...] = (out + b4_ref[...]).astype(o_ref.dtype)


def _fold_bn_into_linears(p):
    """Fold eval-mode BN affine (s, t) of each block into the *next* Linear (sign-safe)."""
    w1, b1 = p["w1"], p["b1"]
    w2 = p["s1"].T * p["w2"]
    b2 = p["b2"] + p["t1"] @ p["w2"]
    w3 = p["s2"].T * p["w3"]
    b3 = p["b3"] + p["t2"] @ p["w3"]
    w4 = p["s3"].T * p["w4"]
    b4 = p["b4"] + p["t3"] @ p["w4"]
    return (w1, b1), (w2, b2), (w3, b3), (w4, b4)


def _pick_tile_b(B, max_tile=4096):
    """>=2 grid steps when B allows (2 TCs on v7x / megacore), lane-aligned, capped."""
    per_core = -(-B // 2)                       # cdiv(B, 2)
    tile = ((per_core + 127) // 128) * 128      # round up to lane width
    return max(128, min(tile, max_tile))


def binary_classifier_forward(x, params, *, tile_b=None):
    """x: [B, input_size] float32. params: dict from init_params. Returns [B, 1] f32."""
    B, F = x.shape
    if tile_b is None:
        tile_b = _pick_tile_b(B)
    assert tile_b % 128 == 0, "tile_b must be a multiple of 128 (lane-dense output)"

    (w1, b1), (w2, b2), (w3, b3), (w4, b4) = _fold_bn_into_linears(params)

    # Pre-transpose weights to (out, in) feature-major form; bf16 MXU operands.
    w1t = w1.T.astype(jnp.bfloat16)   # (48, F)
    w2t = w2.T.astype(jnp.bfloat16)   # (24, 48)
    w3t = w3.T.astype(jnp.bfloat16)   # (12, 24)
    w4t = w4.T.astype(jnp.bfloat16)   # (1, 12)
    # Biases as f32 column vectors (broadcast along the lane-dense batch axis).
    b1c = b1.reshape(-1, 1).astype(jnp.float32)   # (48, 1)
    b2c = b2.reshape(-1, 1).astype(jnp.float32)   # (24, 1)
    b3c = b3.reshape(-1, 1).astype(jnp.float32)   # (12, 1)
    b4c = b4.reshape(-1, 1).astype(jnp.float32)   # (1, 1)

    num_tiles = pl.cdiv(B, tile_b)                # last block may be partial (no pad)

    rep = lambda a: pl.BlockSpec(a.shape, lambda i: (0, 0))   # replicated constants

    grid_spec = pltpu.PrefetchScalarGridSpec(
        num_scalar_prefetch=0,
        grid=(num_tiles,),
        in_specs=[
            pl.BlockSpec((tile_b, F), lambda i: (i, 0)),
            rep(w1t), rep(w2t), rep(w3t), rep(w4t),
            rep(b1c), rep(b2c), rep(b3c), rep(b4c),
        ],
        out_specs=pl.BlockSpec((1, tile_b), lambda i: (0, i)),
    )

    flops = 2 * B * (F * 48 + 48 * 24 + 24 * 12 + 12 * 1)
    bytes_accessed = (B * F * 4 + B * 4
                      + 2 * (F * 48 + 48 * 24 + 24 * 12 + 12)
                      + 4 * (48 + 24 + 12 + 1))

    out_row = pl.pallas_call(
        _mlp_kernel,
        out_shape=jax.ShapeDtypeStruct((1, B), jnp.float32),
        grid_spec=grid_spec,
        compiler_params=pltpu.CompilerParams(
            dimension_semantics=("parallel",)),
        cost_estimate=pl.CostEstimate(
            flops=flops, transcendentals=0, bytes_accessed=bytes_accessed),
    )(x, w1t, w2t, w3t, w4t, b1c, b2c, b3c, b4c)

    return out_row.reshape(B, 1)


def init_params(key, input_size):
    """PyTorch-like Linear init (uniform +-1/sqrt(fan_in)) plus non-trivial BN stats
    (so the BN fold is actually exercised by the correctness check)."""
    dims = [input_size, 48, 24, 12, 1]
    params = {}
    keys = jax.random.split(key, 24)
    ki = 0
    for li in range(4):
        fan_in, fan_out = dims[li], dims[li + 1]
        bound = 1.0 / jnp.sqrt(jnp.float32(fan_in))
        params[f"w{li + 1}"] = jax.random.uniform(
            keys[ki], (fan_in, fan_out), minval=-bound, maxval=bound, dtype=jnp.float32)
        ki += 1
        params[f"b{li + 1}"] = jax.random.uniform(
            keys[ki], (1, fan_out), minval=-bound, maxval=bound, dtype=jnp.float32)
        ki += 1
        if li < 3:  # BatchNorm1d after the first three blocks (eval-mode fold)
            gamma = 1.0 + 0.1 * jax.random.normal(keys[ki], (1, fan_out), jnp.float32); ki += 1
            beta = 0.1 * jax.random.normal(keys[ki], (1, fan_out), jnp.float32); ki += 1
            running_mean = 0.1 * jax.random.normal(keys[ki], (1, fan_out), jnp.float32); ki += 1
            running_var = jax.random.uniform(
                keys[ki], (1, fan_out), minval=0.5, maxval=1.5, dtype=jnp.float32); ki += 1
            eps = 1e-5
            scale = gamma / jnp.sqrt(running_var + eps)
            shift = beta - running_mean * scale
            params[f"s{li + 1}"] = scale
            params[f"t{li + 1}"] = shift
    return params


def reference_forward(x, p):
    """Pure-JAX f32 reference (un-folded eval-mode semantics) for correctness checking."""
    h = jnp.maximum(x @ p["w1"] + p["b1"], 0.0) * p["s1"] + p["t1"]
    h = jnp.maximum(h @ p["w2"] + p["b2"], 0.0) * p["s2"] + p["t2"]
    h = jnp.maximum(h @ p["w3"] + p["b3"], 0.0) * p["s3"] + p["t3"]
    return h @ p["w4"] + p["b4"]


if __name__ == "__main__":
    key = jax.random.PRNGKey(0)
    k_x, k_x2, k_x3, k_p = jax.random.split(key, 4)

    input_size = 32
    params = init_params(k_p, input_size)
    # bf16 MXU operands -> tolerance loosened vs the pure-f32 reference.
    TOL = dict(atol=5e-2, rtol=5e-2)

    # Case 1: tiny batch, auto tile (single partial block; no wrapper padding).
    x = jax.random.normal(k_x, (8, input_size), dtype=jnp.float32)
    out = jax.block_until_ready(binary_classifier_forward(x, params))
    ref = reference_forward(x, params)
    assert out.shape == (8, 1)
    assert jnp.allclose(out, ref, **TOL), "mismatch vs reference (case 1)"

    # Case 2: non-multiple batch -> 2 grid steps, last block partial (masked writeback).
    x2 = jax.random.normal(k_x2, (200, input_size), dtype=jnp.float32)
    out2 = jax.block_until_ready(binary_classifier_forward(x2, params))
    ref2 = reference_forward(x2, params)
    assert out2.shape == (200, 1)
    assert jnp.allclose(out2, ref2, **TOL), "mismatch vs reference (case 2)"

    # Case 3: exactly-dividing batch -> 2 full blocks across both cores.
    x3 = jax.random.normal(k_x3, (256, input_size), dtype=jnp.float32)
    out3 = jax.block_until_ready(binary_classifier_forward(x3, params))
    ref3 = reference_forward(x3, params)
    assert out3.shape == (256, 1)
    assert jnp.allclose(out3, ref3, **TOL), "mismatch vs reference (case 3)"

    print("KERNEL_OK")
</pallas_src>

<mosaic_0001>
module attributes {stable_mosaic.version = 11 : i64} {
  func.func @_mlp_kernel(%arg0: i32, %arg1: memref<128x32xf32, #tpu.memory_space<vmem>>, %arg2: memref<48x32xbf16, #tpu.memory_space<vmem>>, %arg3: memref<24x48xbf16, #tpu.memory_space<vmem>>, %arg4: memref<12x24xbf16, #tpu.memory_space<vmem>>, %arg5: memref<1x12xbf16, #tpu.memory_space<vmem>>, %arg6: memref<48x1xf32, #tpu.memory_space<vmem>>, %arg7: memref<24x1xf32, #tpu.memory_space<vmem>>, %arg8: memref<12x1xf32, #tpu.memory_space<vmem>>, %arg9: memref<1x1xf32, #tpu.memory_space<vmem>>, %arg10: memref<1x128xf32, #tpu.memory_space<vmem>>) attributes {dimension_semantics = [#tpu.dimension_semantics<parallel>], iteration_bounds = array<i64: 1>, scalar_prefetch = 0 : i64, scratch_operands = 0 : i64, tpu.core_type = #tpu.core_type<tc>, window_params = [{transform_indices = @transform_0, window_bounds = array<i64: 128, 32>}, {pipeline_mode = #tpu.pipeline_mode<synchronous>, transform_indices = @transform_1, window_bounds = array<i64: 48, 32>}, {pipeline_mode = #tpu.pipeline_mode<synchronous>, transform_indices = @transform_2, window_bounds = array<i64: 24, 48>}, {pipeline_mode = #tpu.pipeline_mode<synchronous>, transform_indices = @transform_3, window_bounds = array<i64: 12, 24>}, {pipeline_mode = #tpu.pipeline_mode<synchronous>, transform_indices = @transform_4, window_bounds = array<i64: 1, 12>}, {pipeline_mode = #tpu.pipeline_mode<synchronous>, transform_indices = @transform_5, window_bounds = array<i64: 48, 1>}, {pipeline_mode = #tpu.pipeline_mode<synchronous>, transform_indices = @transform_6, window_bounds = array<i64: 24, 1>}, {pipeline_mode = #tpu.pipeline_mode<synchronous>, transform_indices = @transform_7, window_bounds = array<i64: 12, 1>}, {pipeline_mode = #tpu.pipeline_mode<synchronous>, transform_indices = @transform_8, window_bounds = array<i64: 1, 1>}, {transform_indices = @transform_9, window_bounds = array<i64: 1, 128>}]} {
    %c0 = arith.constant 0 : index
    %c0_0 = arith.constant 0 : index
    %0 = vector.load %arg1[%c0, %c0_0] : memref<128x32xf32, #tpu.memory_space<vmem>>, vector<128x32xf32>
    %1 = arith.truncf %0 : vector<128x32xf32> to vector<128x32xbf16>
    %c0_1 = arith.constant 0 : index
    %c0_2 = arith.constant 0 : index
    %2 = vector.load %arg2[%c0_1, %c0_2] : memref<48x32xbf16, #tpu.memory_space<vmem>>, vector<48x32xbf16>
    %cst = arith.constant dense<0.000000e+00> : vector<48x128xf32>
    %3 = tpu.matmul %2, %1, %cst {dimension_numbers = #tpu.dot_dimension_numbers<[1], [1], [0], [0], [0, 0, 1, 0], [], []>} : vector<48x32xbf16>, vector<128x32xbf16>, vector<48x128xf32> -> vector<48x128xf32>
    %c0_3 = arith.constant 0 : index
    %c0_4 = arith.constant 0 : index
    %4 = vector.load %arg6[%c0_3, %c0_4] : memref<48x1xf32, #tpu.memory_space<vmem>>, vector<48x1xf32>
    %5 = vector.broadcast %4 : vector<48x1xf32> to vector<48x128xf32>
    %6 = arith.addf %3, %5 : vector<48x128xf32>
    %cst_5 = arith.constant 0.000000e+00 : f32
    %7 = vector.broadcast %cst_5 : f32 to vector<48x128xf32>
    %8 = arith.maximumf %6, %7 : vector<48x128xf32>
    %c0_6 = arith.constant 0 : index
    %c0_7 = arith.constant 0 : index
    %9 = vector.load %arg3[%c0_6, %c0_7] : memref<24x48xbf16, #tpu.memory_space<vmem>>, vector<24x48xbf16>
    %10 = arith.truncf %8 : vector<48x128xf32> to vector<48x128xbf16>
    %cst_8 = arith.constant dense<0.000000e+00> : vector<24x128xf32>
    %11 = tpu.matmul %9, %10, %cst_8 {dimension_numbers = #tpu.dot_dimension_numbers<[1], [0], [0], [1], [0, 0, 1, 1], [], []>} : vector<24x48xbf16>, vector<48x128xbf16>, vector<24x128xf32> -> vector<24x128xf32>
    %c0_9 = arith.constant 0 : index
    %c0_10 = arith.constant 0 : index
    %12 = vector.load %arg7[%c0_9, %c0_10] : memref<24x1xf32, #tpu.memory_space<vmem>>, vector<24x1xf32>
    %13 = vector.broadcast %12 : vector<24x1xf32> to vector<24x128xf32>
    %14 = arith.addf %11, %13 : vector<24x128xf32>
    %cst_11 = arith.constant 0.000000e+00 : f32
    %15 = vector.broadcast %cst_11 : f32 to vector<24x128xf32>
    %16 = arith.maximumf %14, %15 : vector<24x128xf32>
    %c0_12 = arith.constant 0 : index
    %c0_13 = arith.constant 0 : index
    %17 = vector.load %arg4[%c0_12, %c0_13] : memref<12x24xbf16, #tpu.memory_space<vmem>>, vector<12x24xbf16>
    %18 = arith.truncf %16 : vector<24x128xf32> to vector<24x128xbf16>
    %cst_14 = arith.constant dense<0.000000e+00> : vector<12x128xf32>
    %19 = tpu.matmul %17, %18, %cst_14 {dimension_numbers = #tpu.dot_dimension_numbers<[1], [0], [0], [1], [0, 0, 1, 1], [], []>} : vector<12x24xbf16>, vector<24x128xbf16>, vector<12x128xf32> -> vector<12x128xf32>
    %c0_15 = arith.constant 0 : index
    %c0_16 = arith.constant 0 : index
    %20 = vector.load %arg8[%c0_15, %c0_16] : memref<12x1xf32, #tpu.memory_space<vmem>>, vector<12x1xf32>
    %21 = vector.broadcast %20 : vector<12x1xf32> to vector<12x128xf32>
    %22 = arith.addf %19, %21 : vector<12x128xf32>
    %cst_17 = arith.constant 0.000000e+00 : f32
    %23 = vector.broadcast %cst_17 : f32 to vector<12x128xf32>
    %24 = arith.maximumf %22, %23 : vector<12x128xf32>
    %c0_18 = arith.constant 0 : index
    %c0_19 = arith.constant 0 : index
    %25 = vector.load %arg5[%c0_18, %c0_19] : memref<1x12xbf16, #tpu.memory_space<vmem>>, vector<1x12xbf16>
    %26 = arith.truncf %24 : vector<12x128xf32> to vector<12x128xbf16>
    %cst_20 = arith.constant dense<0.000000e+00> : vector<1x128xf32>
    %27 = tpu.matmul %25, %26, %cst_20 {dimension_numbers = #tpu.dot_dimension_numbers<[1], [0], [0], [1], [0, 0, 1, 1], [], []>} : vector<1x12xbf16>, vector<12x128xbf16>, vector<1x128xf32> -> vector<1x128xf32>
    %c0_21 = arith.constant 0 : index
    %c0_22 = arith.constant 0 : index
    %28 = vector.load %arg9[%c0_21, %c0_22] : memref<1x1xf32, #tpu.memory_space<vmem>>, vector<1x1xf32>
    %29 = vector.broadcast %28 : vector<1x1xf32> to vector<1x128xf32>
    %30 = arith.addf %27, %29 : vector<1x128xf32>
    %c0_23 = arith.constant 0 : index
    %c0_24 = arith.constant 0 : index
    %31 = vector.load %arg10[%c0_23, %c0_24] : memref<1x128xf32, #tpu.memory_space<vmem>>, vector<1x128xf32>
    tpu.vector_store %arg10[%c0_23, %c0_24], %30 {strides = array<i32>} : memref<1x128xf32, #tpu.memory_space<vmem>>, vector<1x128xf32>,
    return
  }
  func.func @transform_0(%arg0: i32) -> (i32, i32) {
    %c0_i32 = arith.constant 0 : i32
    %c0_i32_0 = arith.constant 0 : i32
    return %arg0, %c0_i32 : i32, i32
  }
  func.func @transform_1(%arg0: i32) -> (i32, i32) {
    %c0_i32 = arith.constant 0 : i32
    %c0_i32_0 = arith.constant 0 : i32
    %c0_i32_1 = arith.constant 0 : i32
    return %c0_i32, %c0_i32_0 : i32, i32
  }
  func.func @transform_2(%arg0: i32) -> (i32, i32) {
    %c0_i32 = arith.constant 0 : i32
    %c0_i32_0 = arith.constant 0 : i32
    %c0_i32_1 = arith.constant 0 : i32
    return %c0_i32, %c0_i32_0 : i32, i32
  }
  func.func @transform_3(%arg0: i32) -> (i32, i32) {
    %c0_i32 = arith.constant 0 : i32
    %c0_i32_0 = arith.constant 0 : i32
    %c0_i32_1 = arith.constant 0 : i32
    return %c0_i32, %c0_i32_0 : i32, i32
  }
  func.func @transform_4(%arg0: i32) -> (i32, i32) {
    %c0_i32 = arith.constant 0 : i32
    %c0_i32_0 = arith.constant 0 : i32
    %c0_i32_1 = arith.constant 0 : i32
    return %c0_i32, %c0_i32_0 : i32, i32
  }
  func.func @transform_5(%arg0: i32) -> (i32, i32) {
    %c0_i32 = arith.constant 0 : i32
    %c0_i32_0 = arith.constant 0 : i32
    %c0_i32_1 = arith.constant 0 : i32
    return %c0_i32, %c0_i32_0 : i32, i32
  }
  func.func @transform_6(%arg0: i32) -> (i32, i32) {
    %c0_i32 = arith.constant 0 : i32
    %c0_i32_0 = arith.constant 0 : i32
    %c0_i32_1 = arith.constant 0 : i32
    return %c0_i32, %c0_i32_0 : i32, i32
  }
  func.func @transform_7(%arg0: i32) -> (i32, i32) {
    %c0_i32 = arith.constant 0 : i32
    %c0_i32_0 = arith.constant 0 : i32
    %c0_i32_1 = arith.constant 0 : i32
    return %c0_i32, %c0_i32_0 : i32, i32
  }
  func.func @transform_8(%arg0: i32) -> (i32, i32) {
    %c0_i32 = arith.constant 0 : i32
    %c0_i32_0 = arith.constant 0 : i32
    %c0_i32_1 = arith.constant 0 : i32
    return %c0_i32, %c0_i32_0 : i32, i32
  }
  func.func @transform_9(%arg0: i32) -> (i32, i32) {
    %c0_i32 = arith.constant 0 : i32
    %c0_i32_0 = arith.constant 0 : i32
    return %c0_i32, %arg0 : i32, i32
  }
}

</mosaic_0001>

<llo_original>
// kernel: tpu_custom_call.1
$region0: #{tpu_custom_call.1}
  #allocation0 [shape = 'u32[]', space=smem, size = 0x4, offset = 0x4, fixed_abs, tag = 'smem constant byte address 0x4 - core index']
  #allocation1 [shape = 'u32[144,128]{1,0:T(1,128)}', space=vmem, size = 0x12000, scoped, tag = 'internal scratch']
  #allocation2 [shape = 'f32[1,1]{1,0:T(1,128)S(1)}', space=vmem, size = 0x200, scoped, tag = 'scoped memory for tpu_custom_call.1']
  %s0 = inlined_call_operand.vmem [shape: f32[8,32], index: 0, kind: input, shape index: {}]
  %s1 = inlined_call_operand.vmem [shape: bf16[48,32], index: 1, kind: input, shape index: {}]
  %s2 = inlined_call_operand.vmem [shape: bf16[24,48], index: 2, kind: input, shape index: {}]
  %s3 = inlined_call_operand.vmem [shape: bf16[12,24], index: 3, kind: input, shape index: {}]
  %s4 = inlined_call_operand.vmem [shape: bf16[1,12], index: 4, kind: input, shape index: {}]
  %s5 = inlined_call_operand.vmem [shape: f32[48,1], index: 5, kind: input, shape index: {}]
  %s6 = inlined_call_operand.vmem [shape: f32[24,1], index: 6, kind: input, shape index: {}]
  %s7 = inlined_call_operand.vmem [shape: f32[12,1], index: 7, kind: input, shape index: {}]
  %s8 = inlined_call_operand.<no memory space> [shape: f32[1,1], index: 8, kind: input, shape index: {}]
  %s9 = inlined_call_operand.hbm [shape: f32[1,8], index: 9, kind: output, shape index: {}]
  %s10 = sld [smem:[#allocation0]]
  $region46: #{tpu_custom_call.1} parent=0
    _
  %s12 = ssub.s32 1, %s10
  %s13 = scalar_select 0, %s12, %s10
  %v14 = vstv %s8
  %15 = vst [vmem:[#allocation2] sm:$0x1] %v14
  $region1: #{tpu_custom_call.1} parent=0
    #allocation3 [shape = 'u8[512]{0}', space=vmem, size = 0x400, scoped, tag = 'output window, operand 0, single buffered']
    #allocation4 [shape = 's32[1]{0}', space=sflag, size = 0x4, scoped, tag = 'scoped memory for tpu_custom_call.1']
    %16 = vsyncpa [#allocation4], 0
    // Predicated region
    $region2: #{tpu_custom_call.1} parent=1 // pred_check
      _
    $region3: #{tpu_custom_call.1} parent=1 // pred_check_branch
      %18 = sbr.rel (0) target = $region5
    $region4: #{tpu_custom_call.1} parent=1 // pred_region
      _
    $region5: #{tpu_custom_call.1} parent=1 // pred_fallthru
      _
    // Predicated region
    $region6: #{tpu_custom_call.1} parent=1 // pred_check
      _
    $region7: #{tpu_custom_call.1} parent=1 // pred_check_branch
      %20 = sbr.rel (0) target = $region9
    $region8: #{tpu_custom_call.1} parent=1 // pred_region
      _
    $region9: #{tpu_custom_call.1} parent=1 // pred_fallthru
      _
    // Predicated region
    $region10: #{tpu_custom_call.1} parent=1 // pred_check
      _
    $region11: #{tpu_custom_call.1} parent=1 // pred_check_branch
      %22 = sbr.rel (0) target = $region13
    $region12: #{tpu_custom_call.1} parent=1 // pred_region
      _
    $region13: #{tpu_custom_call.1} parent=1 // pred_fallthru
      _
    // Predicated region
    $region14: #{tpu_custom_call.1} parent=1 // pred_check
      _
    $region15: #{tpu_custom_call.1} parent=1 // pred_check_branch
      %24 = sbr.rel (0) target = $region17
    $region16: #{tpu_custom_call.1} parent=1 // pred_region
      _
    $region17: #{tpu_custom_call.1} parent=1 // pred_fallthru
      _
    // Predicated region
    $region18: #{tpu_custom_call.1} parent=1 // pred_check
      _
    $region19: #{tpu_custom_call.1} parent=1 // pred_check_branch
      %26 = sbr.rel (0) target = $region21
    $region20: #{tpu_custom_call.1} parent=1 // pred_region
      _
    $region21: #{tpu_custom_call.1} parent=1 // pred_fallthru
      _
    // Predicated region
    $region22: #{tpu_custom_call.1} parent=1 // pred_check
      _
    $region23: #{tpu_custom_call.1} parent=1 // pred_check_branch
      %28 = sbr.rel (0) target = $region25
    $region24: #{tpu_custom_call.1} parent=1 // pred_region
      _
    $region25: #{tpu_custom_call.1} parent=1 // pred_fallthru
      _
    // Predicated region
    $region26: #{tpu_custom_call.1} parent=1 // pred_check
      _
    $region27: #{tpu_custom_call.1} parent=1 // pred_check_branch
      %30 = sbr.rel (0) target = $region29
    $region28: #{tpu_custom_call.1} parent=1 // pred_region
      _
    $region29: #{tpu_custom_call.1} parent=1 // pred_fallthru
      _
    // Predicated region
    $region30: #{tpu_custom_call.1} parent=1 // pred_check
      _
    $region31: #{tpu_custom_call.1} parent=1 // pred_check_branch
      %32 = sbr.rel (0) target = $region33
    $region32: #{tpu_custom_call.1} parent=1 // pred_region
      _
    $region33: #{tpu_custom_call.1} parent=1 // pred_fallthru
      _
    // Predicated region
    $region34: #{tpu_custom_call.1} parent=1 // pred_check
      _
    $region35: #{tpu_custom_call.1} parent=1 // pred_check_branch
      %34 = sbr.rel (0) target = $region37
    $region36: #{tpu_custom_call.1} parent=1 // pred_region
      _
    $region37: #{tpu_custom_call.1} parent=1 // pred_fallthru
      _
    %v36 = vld [vmem:[%s0] sm:$0xff]
    %v37 = vld [vmem:[%s0 + $0x8] sm:$0xff]
    %v38 = vld [vmem:[%s0 + $0x10] sm:$0xff]
    %v39 = vld [vmem:[%s0 + $0x18] sm:$0xff]
    %v40 = vld [vmem:[%s0 + $0x20] sm:$0xff]
    %v41 = vld [vmem:[%s0 + $0x28] sm:$0xff]
    %v42 = vld [vmem:[%s0 + $0x30] sm:$0xff]
    %v43 = vld [vmem:[%s0 + $0x38] sm:$0xff]
    %v44 = vld [vmem:[%s0 + $0x40] sm:$0xff]
    %v45 = vld [vmem:[%s0 + $0x48] sm:$0xff]
    %v46 = vld [vmem:[%s0 + $0x50] sm:$0xff]
    %v47 = vld [vmem:[%s0 + $0x58] sm:$0xff]
    %v48 = vld [vmem:[%s0 + $0x60] sm:$0xff]
    %v49 = vld [vmem:[%s0 + $0x68] sm:$0xff]
    %v50 = vld [vmem:[%s0 + $0x70] sm:$0xff]
    %v51 = vld [vmem:[%s0 + $0x78] sm:$0xff]
    %v52 = vpack.c.bf16 %v37, %v36
    %v53 = vpack.c.bf16 %v39, %v38
    %v54 = vpack.c.bf16 %v41, %v40
    %v55 = vpack.c.bf16 %v43, %v42
    %v56 = vpack.c.bf16 %v45, %v44
    %v57 = vpack.c.bf16 %v47, %v46
    %v58 = vpack.c.bf16 %v49, %v48
    %v59 = vpack.c.bf16 %v51, %v50
    %v60 = vld [vmem:[%s1] sm:$0xf]
    %v61 = vld [vmem:[%s1 + $0x4] sm:$0xf]
    %v62 = vld [vmem:[%s1 + $0x8] sm:$0xf]
    %v63 = vld [vmem:[%s1 + $0xc] sm:$0xf]
    %v64 = vld [vmem:[%s1 + $0x10] sm:$0xf]
    %v65 = vld [vmem:[%s1 + $0x14] sm:$0xf]
    %v66 = vld [vmem:[%s5] sm:$0xff]
    %v67 = vld [vmem:[%s5 + $0x8] sm:$0xff]
    %v68 = vld [vmem:[%s5 + $0x10] sm:$0xff]
    %v69 = vld [vmem:[%s5 + $0x18] sm:$0xff]
    %v70 = vld [vmem:[%s5 + $0x20] sm:$0xff]
    %v71 = vld [vmem:[%s5 + $0x28] sm:$0xff]
    %73 = vset.pattern.permute.xlu0 0
    %74 = vperm.xlu0 %73, %v66
    %v75 = vpop.permute.xlu0 %74
    %78 = vset.pattern.permute.xlu0 0
    %79 = vperm.xlu0 %78, %v67
    %v80 = vpop.permute.xlu0 %79
    %83 = vset.pattern.permute.xlu0 0
    %84 = vperm.xlu0 %83, %v68
    %v85 = vpop.permute.xlu0 %84
    %88 = vset.pattern.permute.xlu0 0
    %89 = vperm.xlu0 %88, %v69
    %v90 = vpop.permute.xlu0 %89
    %93 = vset.pattern.permute.xlu0 0
    %94 = vperm.xlu0 %93, %v70
    %v95 = vpop.permute.xlu0 %94
    %98 = vset.pattern.permute.xlu0 0
    %99 = vperm.xlu0 %98, %v71
    %v100 = vpop.permute.xlu0 %99
    %v108 = vunpack.c.l.b16 %v60
    %v109 = vunpack.c.l.b16 %v61
    %v110 = vunpack.c.l.b16 %v62
    %v111 = vunpack.c.l.b16 %v63
    %v112 = vunpack.c.l.b16 %v64
    %v113 = vunpack.c.l.b16 %v65
    %v114 = vpack.c.b16 %v109, %v108
    %v115 = vpack.c.b16 %v111, %v110
    %v116 = vpack.c.b16 %v113, %v112
    %vm117 = vcmask 261120
    %v119 = vsel %vm117, %v114, 0
    %v122 = vsel %vm117, %v115, 0
    %v125 = vsel %vm117, %v116, 0
    %v128 = vsel %vm117, %v52, 0
    %v131 = vsel %vm117, %v53, 0
    %v134 = vsel %vm117, %v54, 0
    %v137 = vsel %vm117, %v55, 0
    %v140 = vsel %vm117, %v56, 0
    %v143 = vsel %vm117, %v57, 0
    %v146 = vsel %vm117, %v58, 0
    %v149 = vsel %vm117, %v59, 0
    %151 = vmatprep.subr.bf16.mxu0 0
    %152 = vmatpush1.bf16.xpose.msra.mxu0 %v128
    %153 = vmatprep.subr.bf16.mxu0 0
    %154 = vmatpush1.bf16.xpose.msra.mxu0 %v131
    %155 = vmatprep.subr.bf16.mxu0 0
    %156 = vmatpush1.bf16.xpose.msra.mxu0 %v134
    %157 = vmatprep.subr.bf16.mxu0 0
    %158 = vmatpush1.bf16.xpose.msra.mxu0 %v137
    %159 = vmatprep.subr.bf16.mxu0 0
    %160 = vmatpush1.bf16.xpose.msra.mxu0 %v140
    %161 = vmatprep.subr.bf16.mxu0 0
    %162 = vmatpush1.bf16.xpose.msra.mxu0 %v143
    %163 = vmatprep.subr.bf16.mxu0 0
    %164 = vmatpush1.bf16.xpose.msra.mxu0 %v146
    %165 = vmatprep.subr.bf16.mxu0 0
    %166 = vmatpush1.bf16.xpose.msra.mxu0 %v149
    %167 = vmatprep.subr.bf16.mxu0 0
    %168 = vmatpush1.bf16.xpose.msra.mxu0 0
    %169 = vmatprep.subr.bf16.mxu0 0
    %170 = vmatpush1.bf16.xpose.msra.mxu0 0
    %171 = vmatprep.subr.bf16.mxu0 0
    %172 = vmatpush1.bf16.xpose.msra.mxu0 0
    %173 = vmatprep.subr.bf16.mxu0 0
    %174 = vmatpush1.bf16.xpose.msra.mxu0 0
    %175 = vmatprep.subr.bf16.mxu0 0
    %176 = vmatpush1.bf16.xpose.msra.mxu0 0
    %177 = vmatprep.subr.bf16.mxu0 0
    %178 = vmatpush1.bf16.xpose.msra.mxu0 0
    %179 = vmatprep.subr.bf16.mxu0 0
    %180 = vmatpush1.bf16.xpose.msra.mxu0 0
    %181 = vmatprep.subr.bf16.mxu0 0
    %182 = vmatpush1.bf16.xpose.msra.mxu0 0
    %183 = vmatprep.mubr.bf16.mxu0 0
    %184 = vmatmul.mubr.bf16.gmra.mrb[0].mxu0 %v119
    %v185 = vpop.f32.mrb[0].mxu0
    %v186 = vadd.f32 %v75, %v185
    %v187 = vpop.f32.mrb[0].mxu0
    %v188 = vpop.f32.mrb[0].mxu0
    %v189 = vadd.f32 %v80, %v188
    %v190 = vpop.f32.mrb[0].mxu0
    %191 = vmatprep.mubr.bf16.mxu0 0
    %192 = vmatmul.mubr.bf16.gmra.mrb[0].mxu0 %v122
    %v193 = vpop.f32.mrb[0].mxu0
    %v194 = vadd.f32 %v85, %v193
    %v195 = vpop.f32.mrb[0].mxu0
    %v196 = vpop.f32.mrb[0].mxu0
    %v197 = vadd.f32 %v90, %v196
    %v198 = vpop.f32.mrb[0].mxu0
    %199 = vmatprep.mubr.bf16.mxu0 0
    %200 = vmatmul.mubr.bf16.gmra.mrb[0].mxu0 %v125
    %v201 = vpop.f32.mrb[0].mxu0
    %v202 = vadd.f32 %v95, %v201
    %v203 = vpop.f32.mrb[0].mxu0
    %v204 = vpop.f32.mrb[0].mxu0
    %v205 = vadd.f32 %v100, %v204
    %v206 = vpop.f32.mrb[0].mxu0
    %207 = vdwg.mxu0
    %v208 = vmax.f32 %v186, 0.0
    %v209 = vmax.f32 %v189, 0.0
    %v210 = vmax.f32 %v194, 0.0
    %v211 = vmax.f32 %v197, 0.0
    %v212 = vmax.f32 %v202, 0.0
    %v213 = vmax.f32 %v205, 0.0
    %v214 = vld [vmem:[%s2] sm:$0xf]
    %v215 = vld [vmem:[%s2 + $0x4] sm:$0xf]
    %v216 = vld [vmem:[%s2 + $0x8] sm:$0xf]
    %v217 = vpack.c.bf16 %v209, %v208
    %v218 = vpack.c.bf16 %v211, %v210
    %v219 = vpack.c.bf16 %v213, %v212
    %v220 = vld [vmem:[%s6] sm:$0xff]
    %v221 = vld [vmem:[%s6 + $0x8] sm:$0xff]
    %v222 = vld [vmem:[%s6 + $0x10] sm:$0xff]
    %224 = vset.pattern.permute.xlu0 0
    %225 = vperm.xlu0 %224, %v220
    %v226 = vpop.permute.xlu0 %225
    %229 = vset.pattern.permute.xlu0 0
    %230 = vperm.xlu0 %229, %v221
    %v231 = vpop.permute.xlu0 %230
    %234 = vset.pattern.permute.xlu0 0
    %235 = vperm.xlu0 %234, %v222
    %v236 = vpop.permute.xlu0 %235
    %v241 = vunpack.c.l.b16 %v214
    %v242 = vunpack.c.l.b16 %v215
    %v243 = vunpack.c.l.b16 %v216
    %v244 = vpack.c.b16 %v242, %v241
    %v245 = vpack.c.b16 %v243, %v243
    %vm246 = vcmask 392192
    %v248 = vsel %vm246, %v244, 0
    %v251 = vsel %vm246, %v245, 0
    %253 = vmatprep.subr.bf16.mxu0 0
    %254 = vmatpush1.bf16.msra.mxu0 %v217
    %255 = vmatprep.subr.bf16.mxu0 0
    %256 = vmatpush1.bf16.msra.mxu0 %v218
    %257 = vmatprep.subr.bf16.mxu0 0
    %258 = vmatpush1.bf16.msra.mxu0 %v219
    %259 = vmatprep.subr.bf16.mxu0 0
    %260 = vmatpush1.bf16.msra.mxu0 0
    %261 = vmatprep.subr.bf16.mxu0 0
    %262 = vmatpush1.bf16.msra.mxu0 0
    %263 = vmatprep.subr.bf16.mxu0 0
    %264 = vmatpush1.bf16.msra.mxu0 0
    %265 = vmatprep.subr.bf16.mxu0 0
    %266 = vmatpush1.bf16.msra.mxu0 0
    %267 = vmatprep.subr.bf16.mxu0 0
    %268 = vmatpush1.bf16.msra.mxu0 0
    %269 = vmatprep.subr.bf16.mxu0 0
    %270 = vmatpush1.bf16.msra.mxu0 0
    %271 = vmatprep.subr.bf16.mxu0 0
    %272 = vmatpush1.bf16.msra.mxu0 0
    %273 = vmatprep.subr.bf16.mxu0 0
    %274 = vmatpush1.bf16.msra.mxu0 0
    %275 = vmatprep.subr.bf16.mxu0 0
    %276 = vmatpush1.bf16.msra.mxu0 0
    %277 = vmatprep.subr.bf16.mxu0 0
    %278 = vmatpush1.bf16.msra.mxu0 0
    %279 = vmatprep.subr.bf16.mxu0 0
    %280 = vmatpush1.bf16.msra.mxu0 0
    %281 = vmatprep.subr.bf16.mxu0 0
    %282 = vmatpush1.bf16.msra.mxu0 0
    %283 = vmatprep.subr.bf16.mxu0 0
    %284 = vmatpush1.bf16.msra.mxu0 0
    %285 = vmatprep.mubr.bf16.mxu0 0
    %286 = vmatmul.mubr.bf16.gmra.mrb[0].mxu0 %v248
    %v287 = vpop.f32.mrb[0].mxu0
    %v288 = vadd.f32 %v226, %v287
    %v289 = vpop.f32.mrb[0].mxu0
    %v290 = vpop.f32.mrb[0].mxu0
    %v291 = vadd.f32 %v231, %v290
    %v292 = vpop.f32.mrb[0].mxu0
    %293 = vmatprep.mubr.bf16.mxu0 0
    %294 = vmatmul.mubr.bf16.gmra.mrb[0].mxu0 %v251
    %v295 = vpop.f32.mrb[0].mxu0
    %v296 = vadd.f32 %v236, %v295
    %v297 = vpop.f32.mrb[0].mxu0
    %v298 = vpop.f32.mrb[0].mxu0
    %v299 = vpop.f32.mrb[0].mxu0
    %300 = vdwg.mxu0
    %v301 = vmax.f32 %v288, 0.0
    %v302 = vmax.f32 %v291, 0.0
    %v303 = vmax.f32 %v296, 0.0
    %v304 = vld [vmem:[%s3] sm:$0xf]
    %v305 = vld [vmem:[%s3 + $0x4] sm:$0x3]
    %v306 = vpack.c.bf16 %v302, %v301
    %v307 = vpack.c.bf16 %v303, %v303
    %v308 = vld [vmem:[%s7] sm:$0xff]
    %v309 = vld [vmem:[%s7 + $0x8] sm:$0xf]
    %311 = vset.pattern.permute.xlu0 0
    %312 = vperm.xlu0 %311, %v308
    %v313 = vpop.permute.xlu0 %312
    %316 = vset.pattern.permute.xlu0 0
    %317 = vperm.xlu0 %316, %v309
    %v318 = vpop.permute.xlu0 %317
    %v322 = vunpack.c.l.b16 %v304
    %v323 = vunpack.c.l.b16 %v305
    %v324 = vpack.c.b16 %v323, %v322
    %vm325 = vcmask 195584
    %v327 = vsel %vm325, %v324, 0
    %vm329 = vcmask 1043456
    %v331 = vsel %vm329, %v307, 0
    %333 = vmatprep.subr.bf16.mxu0 0
    %334 = vmatpush1.bf16.msra.mxu0 %v306
    %335 = vmatprep.subr.bf16.mxu0 0
    %336 = vmatpush1.bf16.msra.mxu0 %v331
    %337 = vmatprep.subr.bf16.mxu0 0
    %338 = vmatpush1.bf16.msra.mxu0 0
    %339 = vmatprep.subr.bf16.mxu0 0
    %340 = vmatpush1.bf16.msra.mxu0 0
    %341 = vmatprep.subr.bf16.mxu0 0
    %342 = vmatpush1.bf16.msra.mxu0 0
    %343 = vmatprep.subr.bf16.mxu0 0
    %344 = vmatpush1.bf16.msra.mxu0 0
    %345 = vmatprep.subr.bf16.mxu0 0
    %346 = vmatpush1.bf16.msra.mxu0 0
    %347 = vmatprep.subr.bf16.mxu0 0
    %348 = vmatpush1.bf16.msra.mxu0 0
    %349 = vmatprep.subr.bf16.mxu0 0
    %350 = vmatpush1.bf16.msra.mxu0 0
    %351 = vmatprep.subr.bf16.mxu0 0
    %352 = vmatpush1.bf16.msra.mxu0 0
    %353 = vmatprep.subr.bf16.mxu0 0
    %354 = vmatpush1.bf16.msra.mxu0 0
    %355 = vmatprep.subr.bf16.mxu0 0
    %356 = vmatpush1.bf16.msra.mxu0 0
    %357 = vmatprep.subr.bf16.mxu0 0
    %358 = vmatpush1.bf16.msra.mxu0 0
    %359 = vmatprep.subr.bf16.mxu0 0
    %360 = vmatpush1.bf16.msra.mxu0 0
    %361 = vmatprep.subr.bf16.mxu0 0
    %362 = vmatpush1.bf16.msra.mxu0 0
    %363 = vmatprep.subr.bf16.mxu0 0
    %364 = vmatpush1.bf16.msra.mxu0 0
    %365 = vmatprep.mubr.bf16.mxu0 0
    %366 = vmatmul.mubr.bf16.gmra.mrb[0].mxu0 %v327
    %v367 = vpop.f32.mrb[0].mxu0
    %v368 = vadd.f32 %v313, %v367
    %v369 = vpop.f32.mrb[0].mxu0
    %v370 = vpop.f32.mrb[0].mxu0
    %v371 = vadd.f32 %v318, %v370
    %v372 = vpop.f32.mrb[0].mxu0
    %373 = vdwg.mxu0
    %v374 = vmax.f32 %v368, 0.0
    %v375 = vmax.f32 %v371, 0.0
    %v376 = vld [vmem:[%s4] sm:$0x1]
    %v377 = vpack.c.bf16 %v375, %v374
    %v378 = vld [vmem:[#allocation2] sm:$0x1]
    %380 = vset.pattern.permute.xlu0 0
    %381 = vperm.xlu0 %380, %v378
    %v382 = vpop.permute.xlu0 %381
    %v384 = vlaneseq
    %v385 = vshrl.u32 %v384, 7
    %v386 = vsub.s32 0, %v385
    %v387 = vrot.slane %v382, %v386
    %vm388 = vcmask 97280
    %v390 = vsel %vm388, %v376, 0
    %vm392 = vcmask 1045504
    %v394 = vsel %vm392, %v377, 0
    %396 = vmatprep.subr.bf16.mxu0 0
    %397 = vmatpush1.bf16.msra.mxu0 %v394
    %398 = vmatprep.subr.bf16.mxu0 0
    %399 = vmatpush1.bf16.msra.mxu0 0
    %400 = vmatprep.subr.bf16.mxu0 0
    %401 = vmatpush1.bf16.msra.mxu0 0
    %402 = vmatprep.subr.bf16.mxu0 0
    %403 = vmatpush1.bf16.msra.mxu0 0
    %404 = vmatprep.subr.bf16.mxu0 0
    %405 = vmatpush1.bf16.msra.mxu0 0
    %406 = vmatprep.subr.bf16.mxu0 0
    %407 = vmatpush1.bf16.msra.mxu0 0
    %408 = vmatprep.subr.bf16.mxu0 0
    %409 = vmatpush1.bf16.msra.mxu0 0
    %410 = vmatprep.subr.bf16.mxu0 0
    %411 = vmatpush1.bf16.msra.mxu0 0
    %412 = vmatprep.subr.bf16.mxu0 0
    %413 = vmatpush1.bf16.msra.mxu0 0
    %414 = vmatprep.subr.bf16.mxu0 0
    %415 = vmatpush1.bf16.msra.mxu0 0
    %416 = vmatprep.subr.bf16.mxu0 0
    %417 = vmatpush1.bf16.msra.mxu0 0
    %418 = vmatprep.subr.bf16.mxu0 0
    %419 = vmatpush1.bf16.msra.mxu0 0
    %420 = vmatprep.subr.bf16.mxu0 0
    %421 = vmatpush1.bf16.msra.mxu0 0
    %422 = vmatprep.subr.bf16.mxu0 0
    %423 = vmatpush1.bf16.msra.mxu0 0
    %424 = vmatprep.subr.bf16.mxu0 0
    %425 = vmatpush1.bf16.msra.mxu0 0
    %426 = vmatprep.subr.bf16.mxu0 0
    %427 = vmatpush1.bf16.msra.mxu0 0
    %428 = vmatprep.mubr.bf16.mxu0 0
    %429 = vmatmul.mubr.bf16.gmra.mrb[0].mxu0 %v390
    %v430 = vpop.f32.mrb[0].mxu0
    %v431 = vadd.f32 %v387, %v430
    %v432 = vpop.f32.mrb[0].mxu0
    %v433 = vpop.f32.mrb[0].mxu0
    %v434 = vpop.f32.mrb[0].mxu0
    %435 = vdwg.mxu0
    %436 = vst [vmem:[#allocation3] sm:$0x1] %v431
    // Predicated region
    $region38: #{tpu_custom_call.1} parent=1 // pred_check
      _
    $region39: #{tpu_custom_call.1} parent=1 // pred_check_branch
      %438 = sbr.rel (0) target = $region41
    $region40: #{tpu_custom_call.1} parent=1 // pred_region
      %s440 = ssub.s32 16, 16
      %441 = vsyncadd [#allocation4], %s440
      %s443 = sshll.u32 [#allocation3], 4
      %s444 = int_to_ptr.vmem [resolvable:$true] %s443
      %446 = dma.vmem_to_hbm [thread:$0]  %s444, 16, %s9, [#allocation4]
    $region41: #{tpu_custom_call.1} parent=1 // pred_fallthru
      _
    // Predicated region
    $region42: #{tpu_custom_call.1} parent=1 // pred_check
      _
    $region43: #{tpu_custom_call.1} parent=1 // pred_check_branch
      %448 = sbr.rel (0) target = $region45
    $region44: #{tpu_custom_call.1} parent=1 // pred_region
      %449 = dma.done [#allocation4], 16
    $region45: #{tpu_custom_call.1} parent=1 // pred_fallthru
      _
    %450 = vsyncpa [#allocation4], 1

</llo_original>
